<compile_context>
chip_gen: v6e
topology: v6e:2x2x1
jax: 0.10.0
libtpu: 0.0.40
codegen_flags: <defaults>
</compile_context>

<pallas_src>
import functools

import numpy as np

import jax
import jax.numpy as jnp
from jax.experimental import pallas as pl
from jax.experimental.pallas import tpu as pltpu


def _round_up(x, m):
    return ((x + m - 1) // m) * m


def _vmem_capacity_bytes():
    """Physical VMEM per TensorCore, with a conservative (v7x) fallback."""
    try:
        info = pltpu.get_tpu_info()
        cap = int(getattr(info, "vmem_capacity_bytes", 0))
        if cap > 0:
            return cap
    except Exception:  # pragma: no cover - depends on runtime/backend
        pass
    return 64 << 20


def _choose_tile_and_vmem(d_pad, feat_bytes, tile):
    """D- and generation-aware pair-tile size plus the vmem limit to request."""
    cap = _vmem_capacity_bytes()
    vmem_limit = max(32 << 20, min(cap * 3 // 4, 96 << 20))   # ~48 MiB on v7x, 96 on v5e/v6e
    max_t = 1024 if cap >= (100 << 20) else 512               # 1024 only on 128-MiB parts

    if tile is not None:
        return int(tile), int(vmem_limit)

    def est(t):
        feats = 2 * 2 * t * d_pad * feat_bytes   # 2 operands x double buffer
        inter = 6 * t * t * 4                    # gram / loss / mask f32 live copies
        return feats + inter

    t = 128
    for cand in (1024, 512, 256, 128):
        if cand <= max_t and est(cand) <= (vmem_limit * 4) // 5:
            t = cand
            break
    return t, int(vmem_limit)


# --------------------------------------------------------------------------
# Phase 1: L2-normalize feature rows (F.normalize: x / max(||x||_2, 1e-12)).
# --------------------------------------------------------------------------
def _normalize_kernel(x_ref, o_ref):
    x = x_ref[...]                                        # (T, Dp) f32
    sumsq = jnp.sum(x * x, axis=1, keepdims=True)         # (T, 1)
    # sqrt(max(ss, 1e-24)) == max(sqrt(ss), 1e-12); rsqrt runs on the EUP.
    inv = jax.lax.rsqrt(jnp.maximum(sumsq, 1e-24))
    o_ref[...] = (x * inv).astype(o_ref.dtype)            # bf16 or f32 storage


# --------------------------------------------------------------------------
# Phase 2: pair loss over the lower-triangle tiles of the gram matrix.
# --------------------------------------------------------------------------
def _push_pair_kernel(rows_ref, cols_ref, flags_ref,      # scalar-prefetch (SMEM)
                      xr_ref, xc_ref, lab_row_ref, lab_col_ref,
                      rvalid_ref, cvalid_ref, out_ref, *, soft, margin):
    """One lower-triangle (row-tile, col-tile) step.

    out_ref is this row tile's resident accumulator block:
      sublane 0 = masked loss sum, sublane 1 = valid-pair count.
    flag: 0 = padded no-op step, 1 = compute, 2 = compute + init accumulator.
    """
    k = pl.program_id(0) * pl.num_programs(1) + pl.program_id(1)
    flag = flags_ref[k]
    row_tile = rows_ref[k]
    col_tile = cols_ref[k]

    @pl.when(flag == 2)              # first tile of this row block
    def _init():
        out_ref[...] = jnp.zeros_like(out_ref)

    @pl.when(flag > 0)               # real (non-padded) triangle tile
    def _compute():
        # Gram tile: contract on D for both operands (A @ B^T without an
        # explicit transpose); f32 accumulation on the MXU.
        gram = jax.lax.dot_general(
            xr_ref[...], xc_ref[...],
            dimension_numbers=(((1,), (1,)), ((), ())),
            preferred_element_type=jnp.float32)            # (T, T)

        # "labels differ" AND both entries are real rows (not padding).
        pair_ok = jnp.logical_and(
            lab_row_ref[...] != lab_col_ref[...],          # (T,1) vs (1,T) -> (T,T)
            jnp.logical_and(rvalid_ref[...] > 0.5, cvalid_ref[...] > 0.5))

        if soft:
            loss_elem = jnp.log(1.0 + jnp.exp(gram - 1.0))  # EUP-bound path
        else:
            loss_elem = margin - (1.0 - gram)               # VPU-bound path

        def _accumulate(mask):
            if soft:
                active = mask
            else:
                # Hard path: losses > 0 is folded into the valid-pair count.
                active = jnp.logical_and(mask, loss_elem > 0.0)
            loss_sum = jnp.sum(jnp.where(active, loss_elem, 0.0))
            cnt_sum = jnp.sum(jnp.where(active, 1.0, 0.0))
            # Pack both partials into one block: sublane 0 = loss, 1 = count.
            sub = jax.lax.broadcasted_iota(jnp.int32, out_ref.shape, 1)
            out_ref[...] = out_ref[...] + jnp.where(
                sub == 0, loss_sum, jnp.where(sub == 1, cnt_sum, 0.0))

        # Strictly-below-diagonal tiles: triangular mask is all-true.
        @pl.when(row_tile != col_tile)
        def _off_diag():
            _accumulate(pair_ok)

        # Diagonal tiles: build the strict lower-triangle mask locally.
        @pl.when(row_tile == col_tile)
        def _diag():
            tsz = gram.shape[0]
            ri = jax.lax.broadcasted_iota(jnp.int32, (tsz, tsz), 0)
            ci = jax.lax.broadcasted_iota(jnp.int32, (tsz, tsz), 1)
            _accumulate(jnp.logical_and(pair_ok, ri > ci))


def _build_triangle_schedule(nt):
    """Lower-triangle tile schedule split at a row boundary into (up to) two
    balanced contiguous chunks -- one per TensorCore on v7x.

    Returns (rows, cols, flags, num_cores, per_core); flag 0 = padded no-op,
    1 = compute, 2 = compute + init this row's accumulator block.
    """
    num_tri = nt * (nt + 1) // 2
    if nt >= 2:
        best_s, best_diff = 1, None
        for s in range(1, nt):
            c0 = s * (s + 1) // 2
            diff = abs(2 * c0 - num_tri)
            if best_diff is None or diff < best_diff:
                best_s, best_diff = s, diff
        row_ranges = [(0, best_s), (best_s, nt)]
    else:
        row_ranges = [(0, nt)]
    num_cores = len(row_ranges)
    counts = [sum(range(lo + 1, hi + 1)) for lo, hi in row_ranges]
    per_core = max(counts)

    rows = np.zeros(num_cores * per_core, np.int32)
    cols = np.zeros(num_cores * per_core, np.int32)
    flags = np.zeros(num_cores * per_core, np.int32)
    for c, (lo, hi) in enumerate(row_ranges):
        k = c * per_core
        last = (lo, 0)
        for i in range(lo, hi):
            for j in range(i + 1):
                rows[k], cols[k] = i, j
                flags[k] = 2 if j == 0 else 1
                last = (i, j)
                k += 1
        # Padded steps repeat the last real tile (same block indices -> no new
        # DMA, accumulator block stays resident); flag 0 skips init + compute.
        while k < (c + 1) * per_core:
            rows[k], cols[k] = last
            flags[k] = 0
            k += 1
    return rows, cols, flags, num_cores, per_core


def push_loss(features, labels, *, soft=True, margin=0.5, tile=None,
              feature_dtype=None):
    """Pallas implementation of PushLoss.forward.

    features: (N, D) float array, labels: (N,) int array.  Returns scalar f32.
    """
    features = jnp.asarray(features, jnp.float32)
    labels = jnp.asarray(labels, jnp.int32)
    n, d = features.shape

    if feature_dtype is None:
        # bf16 storage halves feature HBM traffic and hits the native bf16 MXU
        # rate; keep f32 at small D where numerics matter more than bandwidth.
        feature_dtype = jnp.bfloat16 if d >= 256 else jnp.float32
    feat_bytes = jnp.dtype(feature_dtype).itemsize

    d_pad = _round_up(max(d, 1), 128)
    t, vmem_limit = _choose_tile_and_vmem(d_pad, feat_bytes, tile)

    # Clamp / align the pair tile: multiple of 8 always, multiple of 128 when
    # the batch spans more than one tile (keeps (1, t) label / validity tiles
    # lane-aligned).
    t = max(8, min(t, _round_up(n, 8)))
    t = _round_up(t, 8)
    if t < n:
        t = _round_up(t, 128)
    n_pad = _round_up(n, t)
    nt = n_pad // t

    x = jnp.pad(features, ((0, n_pad - n), (0, d_pad - d)))
    lab = jnp.pad(labels, (0, n_pad - n))
    valid = (jnp.arange(n_pad) < n).astype(jnp.float32)    # 1.0 real / 0.0 pad

    # ---- Phase 1: normalize rows once (row-tiled, memory-bound). ----
    t_norm = t if t <= 512 else 512
    xn = pl.pallas_call(
        _normalize_kernel,
        out_shape=jax.ShapeDtypeStruct((n_pad, d_pad), feature_dtype),
        grid=(n_pad // t_norm,),
        in_specs=[pl.BlockSpec((t_norm, d_pad), lambda i: (i, 0))],
        out_specs=pl.BlockSpec((t_norm, d_pad), lambda i: (i, 0)),
        compiler_params=pltpu.CompilerParams(
            dimension_semantics=("parallel",),
            vmem_limit_bytes=vmem_limit),
    )(x)

    lab_rows = lab.reshape(n_pad, 1)        # labels of the row-tile entries
    lab_cols = lab.reshape(1, n_pad)        # labels of the column-tile entries
    valid_rows = valid.reshape(n_pad, 1)
    valid_cols = valid.reshape(1, n_pad)

    rows_np, cols_np, flags_np, num_cores, per_core = _build_triangle_schedule(nt)
    rows_sched = jnp.asarray(rows_np)
    cols_sched = jnp.asarray(cols_np)
    flags_sched = jnp.asarray(flags_np)

    def _k(c, m):
        return c * per_core + m

    def row_feat_map(c, m, rows, cols, flags):
        return (rows[_k(c, m)], 0)

    def col_feat_map(c, m, rows, cols, flags):
        return (cols[_k(c, m)], 0)

    def col_vec_map(c, m, rows, cols, flags):
        return (0, cols[_k(c, m)])

    def out_map(c, m, rows, cols, flags):
        return (rows[_k(c, m)], 0, 0)

    kernel = functools.partial(_push_pair_kernel, soft=bool(soft),
                               margin=float(margin))

    # Per-row-tile (loss, count) partials packed into one (nt, 8, 128) output.
    partials = pl.pallas_call(
        kernel,
        out_shape=jax.ShapeDtypeStruct((nt, 8, 128), jnp.float32),
        grid_spec=pltpu.PrefetchScalarGridSpec(
            num_scalar_prefetch=3,
            grid=(num_cores, per_core),
            in_specs=[
                pl.BlockSpec((t, d_pad), row_feat_map),   # row feature tile
                pl.BlockSpec((t, d_pad), col_feat_map),   # col feature tile
                pl.BlockSpec((t, 1), row_feat_map),       # row labels
                pl.BlockSpec((1, t), col_vec_map),        # col labels
                pl.BlockSpec((t, 1), row_feat_map),       # row validity
                pl.BlockSpec((1, t), col_vec_map),        # col validity
            ],
            out_specs=pl.BlockSpec((1, 8, 128), out_map),
        ),
        compiler_params=pltpu.CompilerParams(
            dimension_semantics=("parallel", "arbitrary"),
            vmem_limit_bytes=vmem_limit),
    )(rows_sched, cols_sched, flags_sched,
      xn, xn, lab_rows, lab_cols, valid_rows, valid_cols)

    loss_sum = jnp.sum(partials[:, 0, 0])
    num_valid = jnp.sum(partials[:, 1, 0])
    # num_valid == 0  ->  loss_value = 0  (matches the PyTorch early return).
    return jnp.where(num_valid > 0,
                     loss_sum / jnp.maximum(num_valid, 1.0),
                     jnp.float32(0.0))


# --------------------------------------------------------------------------
# Pure-JAX reference mirroring the PyTorch forward (for self-test).
# --------------------------------------------------------------------------
def _push_loss_ref(features, labels, *, soft=True, margin=0.5):
    x = features.astype(jnp.float32)
    x = x / jnp.maximum(jnp.linalg.norm(x, axis=1, keepdims=True), 1e-12)
    gram = jnp.matmul(x, x.T, precision=jax.lax.Precision.HIGHEST)
    diff = labels[:, None] != labels[None, :]
    tri = jnp.tri(labels.shape[0], k=-1, dtype=bool)
    valid = (diff & tri).astype(jnp.float32)
    if soft:
        losses = jnp.log(1.0 + jnp.exp(gram - 1.0))
    else:
        losses = margin - (1.0 - gram)
        valid = valid * (losses > 0.0).astype(jnp.float32)
    nv = jnp.sum(valid)
    return jnp.where(nv > 0, jnp.sum(losses * valid) / jnp.maximum(nv, 1.0), 0.0)


if __name__ == "__main__":
    key = jax.random.PRNGKey(0)
    kf, kl, kf2, kl2, kf3, kl3 = jax.random.split(key, 6)

    # 1) Small single-tile case (f32 features), soft and hard margins.
    N, D = 8, 32
    feats = jax.random.normal(kf, (N, D), dtype=jnp.float32)
    labs = jax.random.randint(kl, (N,), 0, 3, dtype=jnp.int32)

    out_soft = jax.block_until_ready(push_loss(feats, labs, soft=True))
    ref_soft = _push_loss_ref(feats, labs, soft=True)
    assert jnp.allclose(out_soft, ref_soft, atol=1e-5, rtol=1e-5), (out_soft, ref_soft)

    out_hard = jax.block_until_ready(push_loss(feats, labs, soft=False, margin=0.5))
    ref_hard = _push_loss_ref(feats, labs, soft=False, margin=0.5)
    assert jnp.allclose(out_hard, ref_hard, atol=1e-5, rtol=1e-5), (out_hard, ref_hard)

    # 2) Multi-tile case: exercises the triangle-tile schedule, the two-way
    #    core split (with one padded no-op step), the diagonal iota mask, and
    #    row padding via the validity masks.
    N2, D2 = 200, 32
    feats2 = jax.random.normal(kf2, (N2, D2), dtype=jnp.float32)
    labs2 = jax.random.randint(kl2, (N2,), 0, 5, dtype=jnp.int32)

    out2s = jax.block_until_ready(push_loss(feats2, labs2, soft=True, tile=128))
    ref2s = _push_loss_ref(feats2, labs2, soft=True)
    assert jnp.allclose(out2s, ref2s, atol=1e-4, rtol=1e-4), (out2s, ref2s)

    out2h = jax.block_until_ready(push_loss(feats2, labs2, soft=False, margin=0.5, tile=128))
    ref2h = _push_loss_ref(feats2, labs2, soft=False, margin=0.5)
    assert jnp.allclose(out2h, ref2h, atol=1e-4, rtol=1e-4), (out2h, ref2h)

    # 3) bf16 feature storage (the default for D >= 256): relaxed tolerance.
    N3, D3 = 300, 256
    feats3 = jax.random.normal(kf3, (N3, D3), dtype=jnp.float32)
    labs3 = jax.random.randint(kl3, (N3,), 0, 7, dtype=jnp.int32)

    out3 = jax.block_until_ready(push_loss(feats3, labs3, soft=True, tile=128))
    ref3 = _push_loss_ref(feats3, labs3, soft=True)
    assert jnp.allclose(out3, ref3, atol=3e-3, rtol=3e-2), (out3, ref3)

    print("KERNEL_OK")
</pallas_src>

<mosaic_0001>
module attributes {stable_mosaic.version = 11 : i64} {
  func.func @_normalize_kernel(%arg0: i32, %arg1: memref<8x128xf32, #tpu.memory_space<vmem>>, %arg2: memref<8x128xf32, #tpu.memory_space<vmem>>) attributes {dimension_semantics = [#tpu.dimension_semantics<parallel>], iteration_bounds = array<i64: 1>, scalar_prefetch = 0 : i64, scratch_operands = 0 : i64, tpu.core_type = #tpu.core_type<tc>, window_params = [{transform_indices = @transform_0, window_bounds = array<i64: 8, 128>}, {transform_indices = @transform_1, window_bounds = array<i64: 8, 128>}]} {
    %c0 = arith.constant 0 : index
    %c0_0 = arith.constant 0 : index
    %0 = vector.load %arg1[%c0, %c0_0] : memref<8x128xf32, #tpu.memory_space<vmem>>, vector<8x128xf32>
    %1 = arith.mulf %0, %0 : vector<8x128xf32>
    %cst = arith.constant dense<0.000000e+00> : vector<8xf32>
    %2 = vector.multi_reduction <add>, %1, %cst [1] : vector<8x128xf32> to vector<8xf32>
    %3 = vector.shape_cast %2 : vector<8xf32> to vector<8x1xf32>
    %cst_1 = arith.constant 1.000000e-24 : f32
    %4 = vector.broadcast %cst_1 : f32 to vector<8x1xf32>
    %5 = arith.maximumf %3, %4 : vector<8x1xf32>
    %6 = math.rsqrt %5 : vector<8x1xf32>
    %7 = vector.broadcast %6 : vector<8x1xf32> to vector<8x128xf32>
    %8 = arith.mulf %0, %7 : vector<8x128xf32>
    %c0_2 = arith.constant 0 : index
    %c0_3 = arith.constant 0 : index
    %9 = vector.load %arg2[%c0_2, %c0_3] : memref<8x128xf32, #tpu.memory_space<vmem>>, vector<8x128xf32>
    tpu.vector_store %arg2[%c0_2, %c0_3], %8 {strides = array<i32>} : memref<8x128xf32, #tpu.memory_space<vmem>>, vector<8x128xf32>,
    return
  }
  func.func @transform_0(%arg0: i32) -> (i32, i32) {
    %c0_i32 = arith.constant 0 : i32
    %c0_i32_0 = arith.constant 0 : i32
    return %arg0, %c0_i32 : i32, i32
  }
  func.func @transform_1(%arg0: i32) -> (i32, i32) {
    %c0_i32 = arith.constant 0 : i32
    %c0_i32_0 = arith.constant 0 : i32
    return %arg0, %c0_i32 : i32, i32
  }
}

</mosaic_0001>

<llo_original>
// kernel: tpu_custom_call.1
$region0: #{tpu_custom_call.1}
  #allocation0 [shape = 'u32[]', space=smem, size = 0x4, offset = 0x4, fixed_abs, tag = 'smem constant byte address 0x4 - core index']
  #allocation1 [shape = 'u32[144,128]{1,0:T(1,128)}', space=vmem, size = 0x12000, scoped, tag = 'internal scratch']
  %s0 = inlined_call_operand.hbm [shape: f32[8,128], index: 0, kind: input, shape index: {}]
  %s1 = inlined_call_operand.hbm [shape: f32[8,128], index: 1, kind: output, shape index: {}]
  %s2 = sld [smem:[#allocation0]]
  $region18: #{tpu_custom_call.1} parent=0
    _
  %s4 = ssub.s32 1, %s2
  %s5 = scalar_select 0, %s4, %s2
  $region1: #{tpu_custom_call.1} parent=0
    #allocation2 [shape = 'u8[4096]{0}', space=vmem, size = 0x1000, scoped, tag = 'input window, operand 0, single buffered']
    #allocation3 [shape = 's32[1]{0}', space=sflag, size = 0x4, scoped, tag = 'scoped memory for tpu_custom_call.1']
    #allocation4 [shape = 's32[1]{0}', space=sflag, size = 0x4, scoped, tag = 'scoped memory for tpu_custom_call.1']
    #allocation5 [shape = 'u8[4096]{0}', space=vmem, size = 0x1000, scoped, tag = 'output window, operand 0, single buffered']
    %6 = vsyncpa [#allocation3], 0
    %7 = vsyncpa [#allocation4], 0
    // Predicated region
    $region2: #{tpu_custom_call.1} parent=1 // pred_check
      _
    $region3: #{tpu_custom_call.1} parent=1 // pred_check_branch
      %9 = sbr.rel (0) target = $region5
    $region4: #{tpu_custom_call.1} parent=1 // pred_region
      %s11 = ssub.s32 128, 128
      %12 = vsyncadd [#allocation3], %s11
      %s14 = sshll.u32 [#allocation2], 4
      %s15 = int_to_ptr.vmem [resolvable:$true] %s14
      %17 = dma.hbm_to_vmem [thread:$0]  %s0, 128, %s15, [#allocation3]
    $region5: #{tpu_custom_call.1} parent=1 // pred_fallthru
      _
    // Predicated region
    $region6: #{tpu_custom_call.1} parent=1 // pred_check
      _
    $region7: #{tpu_custom_call.1} parent=1 // pred_check_branch
      %19 = sbr.rel (0) target = $region9
    $region8: #{tpu_custom_call.1} parent=1 // pred_region
      %20 = dma.done [#allocation3], 128
    $region9: #{tpu_custom_call.1} parent=1 // pred_fallthru
      _
    %v21 = vld [vmem:[#allocation2] sm:$0xff]
    %v22 = vmul.f32 %v21, %v21
    %23 = vadd.xlane.f32.xlu0 %v22
    %v24 = vpop.xlane.xlu0 %23
    %v25 = vmax.f32 %v24, 1e-24
    %v26 = vrsqrt.pop %v25
    %v27 = vmul.f32 %v21, %v26
    %28 = vst [vmem:[#allocation5] sm:$0xff] %v27
    // Predicated region
    $region10: #{tpu_custom_call.1} parent=1 // pred_check
      _
    $region11: #{tpu_custom_call.1} parent=1 // pred_check_branch
      %30 = sbr.rel (0) target = $region13
    $region12: #{tpu_custom_call.1} parent=1 // pred_region
      %s32 = ssub.s32 128, 128
      %33 = vsyncadd [#allocation4], %s32
      %s35 = sshll.u32 [#allocation5], 4
      %s36 = int_to_ptr.vmem [resolvable:$true] %s35
      %38 = dma.vmem_to_hbm [thread:$0]  %s36, 128, %s1, [#allocation4]
    $region13: #{tpu_custom_call.1} parent=1 // pred_fallthru
      _
    // Predicated region
    $region14: #{tpu_custom_call.1} parent=1 // pred_check
      _
    $region15: #{tpu_custom_call.1} parent=1 // pred_check_branch
      %40 = sbr.rel (0) target = $region17
    $region16: #{tpu_custom_call.1} parent=1 // pred_region
      %41 = dma.done [#allocation4], 128
    $region17: #{tpu_custom_call.1} parent=1 // pred_fallthru
      _
    %42 = vsyncpa [#allocation3], 1
    %43 = vsyncpa [#allocation4], 1

</llo_original>
